<compile_context>
chip_gen: v7x
topology: tpu7x:2x2x1
jax: 0.10.0
libtpu: 0.0.40
codegen_flags: <defaults>
</compile_context>

<pallas_src>
import functools
import math

import jax
import jax.numpy as jnp
import numpy as np
from jax.experimental import pallas as pl
from jax.experimental.pallas import tpu as pltpu

EPS = 1e-5


def _layernorm_kernel(x_ref, g_ref, b_ref, o_ref, *, inv_dim):
    # x_ref: (ROW_TILE, dim), g_ref/b_ref: (1, dim), o_ref: (ROW_TILE, dim)
    x = x_ref[...].astype(jnp.float32)
    # Two-pass mean/variance (numerically stable, matches PyTorch's biased
    # variance); divides replaced by a single 1/dim multiply.
    mean = jnp.sum(x, axis=-1, keepdims=True) * inv_dim
    xc = x - mean
    var = jnp.sum(xc * xc, axis=-1, keepdims=True) * inv_dim
    inv = jax.lax.rsqrt(var + EPS)
    g = g_ref[...].astype(jnp.float32)
    b = b_ref[...].astype(jnp.float32)
    o_ref[...] = (xc * inv * g + b).astype(o_ref.dtype)


def _layernorm_folded_kernel(x_ref, g_ref, b_ref, seg_ref, segt_ref, o_ref, *,
                             inv_dim):
    # Lane-folded path: x_ref is (ROW_TILE, k*dim) where k = 128/dim logical
    # rows are packed along the 128-lane axis.  Per-logical-row (segmented)
    # reductions/broadcasts are done with tiny matmuls against a 0/1 segment
    # matrix — the MXU is idle in this HBM-bound kernel, and this keeps all
    # loads/stores lane-dense (no masked vst.msk, full-width DMA).
    x = x_ref[...].astype(jnp.float32)                                 # (R, k*dim)
    seg = seg_ref[...]                                                 # (k*dim, k)
    segt = segt_ref[...]                                               # (k, k*dim)
    s1 = jnp.dot(x, seg, preferred_element_type=jnp.float32)          # (R, k)
    mean = jnp.dot(s1 * inv_dim, segt, preferred_element_type=jnp.float32)
    xc = x - mean
    s2 = jnp.dot(xc * xc, seg, preferred_element_type=jnp.float32)    # (R, k)
    inv = jnp.dot(jax.lax.rsqrt(s2 * inv_dim + EPS), segt,
                  preferred_element_type=jnp.float32)
    g = g_ref[...].astype(jnp.float32)
    b = b_ref[...].astype(jnp.float32)
    o_ref[...] = (xc * inv * g + b).astype(o_ref.dtype)


def _sublane_packing(dtype):
    # f32 -> 8 rows/vreg, bf16 -> 16, int8/fp8 -> 32 (sub-32-bit packs sublanes)
    itemsize = jnp.dtype(dtype).itemsize
    return max(8, 32 // itemsize)


def _round_up(x, m):
    return ((x + m - 1) // m) * m


def _tpu_tuning():
    """(target_tile_bytes, vmem_cap_bytes, min_grid_steps) per TPU generation."""
    kind = ""
    try:
        kind = jax.devices()[0].device_kind.lower()
    except Exception:
        pass
    vmem_phys = None
    try:
        vmem_phys = getattr(pltpu.get_tpu_info(), "vmem_capacity_bytes", None)
    except Exception:
        pass
    is_v7 = ("v7" in kind) or ("7x" in kind) or (
        vmem_phys is not None and vmem_phys <= (64 << 20))
    if is_v7:
        # 64 MiB VMEM/TC; 2 TCs -> keep >= 2 steps per TensorCore (>= 8 total
        # when rows allow) so each core's pipeline reaches steady state.
        return 2 << 20, 36 << 20, 8
    if "v5" in kind:
        # ~820 GB/s HBM: per-step overhead already small at ~2 MiB tiles, and
        # the scoped-VMEM default is tight; don't over-inflate tiles.
        return 2 << 20, 64 << 20, 4
    # v6e (and default): 128 MiB VMEM, ~1.4 TB/s HBM.
    return 4 << 20, 80 << 20, 4


@jax.jit
def layer_norm(x, gamma, beta):
    """LayerNorm over the last axis of x. gamma/beta have shape (dim,)."""
    orig_shape = x.shape
    dim = orig_shape[-1]
    n_rows = math.prod(orig_shape[:-1]) if len(orig_shape) > 1 else 1

    target_tile_bytes, vmem_cap, min_steps = _tpu_tuning()
    itemsize = jnp.dtype(x.dtype).itemsize
    packing = _sublane_packing(x.dtype)

    # ---- lane folding for small dim: pack k = 128/dim rows into the lane axis.
    fold = 1
    if dim < 128 and 128 % dim == 0:
        k = 128 // dim
        if n_rows >= k and n_rows % k == 0:
            fold = k
    # TODO(synk): dims < 128 that do not divide 128 (or row counts not
    # divisible by the fold factor) still take the lane-sparse path below.

    R = n_rows // fold          # rows as seen by the kernel
    D = dim * fold              # lane width as seen by the kernel

    x2 = x.reshape(R, D)        # pure reshape of a contiguous array: no copy
    g2 = jnp.tile(gamma.reshape(-1), fold).reshape(1, D)
    b2 = jnp.tile(beta.reshape(-1), fold).reshape(1, D)

    # ---- row-tile sizing: ~target_tile_bytes of input per grid step.
    row_tile = max(packing,
                   (target_tile_bytes // (D * itemsize)) // packing * packing)
    # Keep >= min_steps grid steps when rows allow (>= 2 per TensorCore on
    # v7x) so DMA/compute overlap survives on every core.
    row_tile = max(packing,
                   min(row_tile, _round_up(pl.cdiv(R, min_steps), packing)))

    # ---- VMEM fit: 2x double-buffered input + output tiles, ~3 f32-sized tile
    # temporaries, params, 1 MiB slack.  Shrink the tile to fit the budget.
    def _vmem_needed(rt):
        return 4 * rt * D * itemsize + 3 * rt * D * 4 + 16 * D + (1 << 20)

    bytes_per_row = D * (4 * itemsize + 12)
    row_fit = (vmem_cap - (1 << 20) - 16 * D) // bytes_per_row
    row_fit = (row_fit // packing) * packing
    if row_fit < packing:
        # TODO(synk): tile the feature dim on a second "arbitrary" grid axis
        # with a two-phase (stats, then normalize) reduction for huge dims.
        raise NotImplementedError(
            f"LayerNorm feature dim {dim} too large to fit a {packing}-row "
            f"tile within the {vmem_cap >> 20} MiB VMEM budget.")
    row_tile = min(row_tile, row_fit)

    # A block that exactly covers all rows is always legal (block dim == array
    # dim), so never exceed R; otherwise row_tile stays a multiple of packing
    # and the ragged last block is handled by Pallas (per-row math => padded
    # tail rows never contaminate valid rows; OOB writes are masked).
    row_tile = min(row_tile, R)
    grid = (pl.cdiv(R, row_tile),)

    # Advisory cost: read + write of x, plus gamma/beta; one rsqrt per row.
    io_bytes = (2 * n_rows * dim * itemsize
                + 2 * dim * jnp.dtype(gamma.dtype).itemsize)
    cost = pl.CostEstimate(flops=7 * n_rows * dim,
                           transcendentals=n_rows,
                           bytes_accessed=int(io_bytes))

    vmem_limit = int(min(max(_vmem_needed(row_tile), 4 << 20), vmem_cap))

    x_spec = pl.BlockSpec((row_tile, D), lambda i: (i, 0))
    p_spec = pl.BlockSpec((1, D), lambda i: (0, 0))
    out_spec = pl.BlockSpec((row_tile, D), lambda i: (i, 0))

    if fold > 1:
        seg_np = np.equal(np.arange(D)[:, None] // dim,
                          np.arange(fold)[None, :]).astype(np.float32)
        seg = jnp.asarray(seg_np)            # (k*dim, k)
        segt = jnp.asarray(seg_np.T)         # (k, k*dim)
        kernel = functools.partial(_layernorm_folded_kernel, inv_dim=1.0 / dim)
        in_specs = [x_spec, p_spec, p_spec,
                    pl.BlockSpec((D, fold), lambda i: (0, 0)),
                    pl.BlockSpec((fold, D), lambda i: (0, 0))]
        args = (x2, g2, b2, seg, segt)
    else:
        kernel = functools.partial(_layernorm_kernel, inv_dim=1.0 / dim)
        in_specs = [x_spec, p_spec, p_spec]
        args = (x2, g2, b2)

    out = pl.pallas_call(
        kernel,
        out_shape=jax.ShapeDtypeStruct((R, D), x.dtype),
        grid_spec=pltpu.PrefetchScalarGridSpec(
            num_scalar_prefetch=0,
            grid=grid,
            in_specs=in_specs,
            out_specs=out_spec,
        ),
        compiler_params=pltpu.CompilerParams(
            dimension_semantics=("parallel",),
            vmem_limit_bytes=vmem_limit,
        ),
        cost_estimate=cost,
    )(*args)

    return out.reshape(orig_shape)


def _reference_layer_norm(x, gamma, beta):
    xf = x.astype(jnp.float32)
    mean = jnp.mean(xf, axis=-1, keepdims=True)
    var = jnp.mean((xf - mean) ** 2, axis=-1, keepdims=True)
    xhat = (xf - mean) / jnp.sqrt(var + EPS)
    return (xhat * gamma + beta).astype(x.dtype)


if __name__ == "__main__":
    # Case 1: the original small demo shape (batch=2, seq=8, dim=32),
    # nn.LayerNorm default init (weight=1, bias=0).  Exercises the lane-folded
    # path (k = 4 rows packed into the 128-lane axis).
    key = jax.random.PRNGKey(0)
    x1 = jax.random.normal(key, (2, 8, 32), dtype=jnp.float32)
    g1 = jnp.ones((32,), dtype=jnp.float32)
    b1 = jnp.zeros((32,), dtype=jnp.float32)
    out1 = jax.block_until_ready(layer_norm(x1, g1, b1))
    ref1 = _reference_layer_norm(x1, g1, b1)
    assert out1.shape == x1.shape and out1.dtype == x1.dtype
    assert jnp.allclose(out1, ref1, atol=1e-5, rtol=1e-5)

    # Case 2: lane-dense dim=128 with a row count that does NOT divide the row
    # tile, exercising the ragged last block and non-trivial gamma/beta.
    k2, k3, k4 = jax.random.split(jax.random.PRNGKey(1), 3)
    x2 = jax.random.normal(k2, (3, 7, 128), dtype=jnp.float32)
    g2 = 1.0 + 0.1 * jax.random.normal(k3, (128,), dtype=jnp.float32)
    b2 = 0.1 * jax.random.normal(k4, (128,), dtype=jnp.float32)
    out2 = jax.block_until_ready(layer_norm(x2, g2, b2))
    ref2 = _reference_layer_norm(x2, g2, b2)
    assert out2.shape == x2.shape and out2.dtype == x2.dtype
    assert jnp.allclose(out2, ref2, atol=1e-4, rtol=1e-4)

    # Case 3: bf16 activations (f32 gamma/beta), dim=256 plain path,
    # 16-row sublane packing.
    k5, k6, k7 = jax.random.split(jax.random.PRNGKey(2), 3)
    x3 = jax.random.normal(k5, (2, 16, 256), dtype=jnp.bfloat16)
    g3 = 1.0 + 0.1 * jax.random.normal(k6, (256,), dtype=jnp.float32)
    b3 = 0.1 * jax.random.normal(k7, (256,), dtype=jnp.float32)
    out3 = jax.block_until_ready(layer_norm(x3, g3, b3))
    ref3 = _reference_layer_norm(x3, g3, b3)
    assert out3.shape == x3.shape and out3.dtype == x3.dtype
    assert jnp.allclose(out3.astype(jnp.float32), ref3.astype(jnp.float32),
                        atol=2e-2, rtol=2e-2)

    # Case 4: dim<128 but row count not divisible by the fold factor ->
    # lane-sparse fallback path.
    x4 = jax.random.normal(jax.random.PRNGKey(3), (3, 5, 32), dtype=jnp.float32)
    out4 = jax.block_until_ready(layer_norm(x4, g1, b1))
    ref4 = _reference_layer_norm(x4, g1, b1)
    assert out4.shape == x4.shape and out4.dtype == x4.dtype
    assert jnp.allclose(out4, ref4, atol=1e-5, rtol=1e-5)

    print("KERNEL_OK")
</pallas_src>

<mosaic_0001>
module attributes {stable_mosaic.version = 11 : i64} {
  func.func @_layernorm_folded_kernel(%arg0: i32, %arg1: memref<4x128xf32, #tpu.memory_space<vmem>>, %arg2: memref<1x128xf32, #tpu.memory_space<vmem>>, %arg3: memref<1x128xf32, #tpu.memory_space<vmem>>, %arg4: memref<128x4xf32, #tpu.memory_space<vmem>>, %arg5: memref<4x128xf32, #tpu.memory_space<vmem>>, %arg6: memref<4x128xf32, #tpu.memory_space<vmem>>) attributes {dimension_semantics = [#tpu.dimension_semantics<parallel>], iteration_bounds = array<i64: 1>, scalar_prefetch = 0 : i64, scratch_operands = 0 : i64, tpu.core_type = #tpu.core_type<tc>, window_params = [{transform_indices = @transform_0, window_bounds = array<i64: 4, 128>}, {pipeline_mode = #tpu.pipeline_mode<synchronous>, transform_indices = @transform_1, window_bounds = array<i64: 1, 128>}, {pipeline_mode = #tpu.pipeline_mode<synchronous>, transform_indices = @transform_2, window_bounds = array<i64: 1, 128>}, {pipeline_mode = #tpu.pipeline_mode<synchronous>, transform_indices = @transform_3, window_bounds = array<i64: 128, 4>}, {pipeline_mode = #tpu.pipeline_mode<synchronous>, transform_indices = @transform_4, window_bounds = array<i64: 4, 128>}, {transform_indices = @transform_5, window_bounds = array<i64: 4, 128>}]} {
    %c0 = arith.constant 0 : index
    %c0_0 = arith.constant 0 : index
    %0 = vector.load %arg1[%c0, %c0_0] : memref<4x128xf32, #tpu.memory_space<vmem>>, vector<4x128xf32>
    %c0_1 = arith.constant 0 : index
    %c0_2 = arith.constant 0 : index
    %1 = vector.load %arg4[%c0_1, %c0_2] : memref<128x4xf32, #tpu.memory_space<vmem>>, vector<128x4xf32>
    %c0_3 = arith.constant 0 : index
    %c0_4 = arith.constant 0 : index
    %2 = vector.load %arg5[%c0_3, %c0_4] : memref<4x128xf32, #tpu.memory_space<vmem>>, vector<4x128xf32>
    %cst = arith.constant dense<0.000000e+00> : vector<4x4xf32>
    %3 = tpu.matmul %0, %1, %cst {dimension_numbers = #tpu.dot_dimension_numbers<[1], [0], [0], [1], [0, 0, 1, 1], [], []>} : vector<4x128xf32>, vector<128x4xf32>, vector<4x4xf32> -> vector<4x4xf32>
    %cst_5 = arith.constant 3.125000e-02 : f32
    %4 = vector.broadcast %cst_5 : f32 to vector<4x4xf32>
    %5 = arith.mulf %3, %4 : vector<4x4xf32>
    %cst_6 = arith.constant dense<0.000000e+00> : vector<4x128xf32>
    %6 = tpu.matmul %5, %2, %cst_6 {dimension_numbers = #tpu.dot_dimension_numbers<[1], [0], [0], [1], [0, 0, 1, 1], [], []>} : vector<4x4xf32>, vector<4x128xf32>, vector<4x128xf32> -> vector<4x128xf32>
    %7 = arith.subf %0, %6 : vector<4x128xf32>
    %8 = arith.mulf %7, %7 : vector<4x128xf32>
    %cst_7 = arith.constant dense<0.000000e+00> : vector<4x4xf32>
    %9 = tpu.matmul %8, %1, %cst_7 {dimension_numbers = #tpu.dot_dimension_numbers<[1], [0], [0], [1], [0, 0, 1, 1], [], []>} : vector<4x128xf32>, vector<128x4xf32>, vector<4x4xf32> -> vector<4x4xf32>
    %cst_8 = arith.constant 3.125000e-02 : f32
    %10 = vector.broadcast %cst_8 : f32 to vector<4x4xf32>
    %11 = arith.mulf %9, %10 : vector<4x4xf32>
    %cst_9 = arith.constant 9.99999974E-6 : f32
    %12 = vector.broadcast %cst_9 : f32 to vector<4x4xf32>
    %13 = arith.addf %11, %12 : vector<4x4xf32>
    %14 = math.rsqrt %13 : vector<4x4xf32>
    %cst_10 = arith.constant dense<0.000000e+00> : vector<4x128xf32>
    %15 = tpu.matmul %14, %2, %cst_10 {dimension_numbers = #tpu.dot_dimension_numbers<[1], [0], [0], [1], [0, 0, 1, 1], [], []>} : vector<4x4xf32>, vector<4x128xf32>, vector<4x128xf32> -> vector<4x128xf32>
    %c0_11 = arith.constant 0 : index
    %c0_12 = arith.constant 0 : index
    %16 = vector.load %arg2[%c0_11, %c0_12] : memref<1x128xf32, #tpu.memory_space<vmem>>, vector<1x128xf32>
    %c0_13 = arith.constant 0 : index
    %c0_14 = arith.constant 0 : index
    %17 = vector.load %arg3[%c0_13, %c0_14] : memref<1x128xf32, #tpu.memory_space<vmem>>, vector<1x128xf32>
    %18 = arith.mulf %7, %15 : vector<4x128xf32>
    %19 = vector.broadcast %16 : vector<1x128xf32> to vector<4x128xf32>
    %20 = arith.mulf %18, %19 : vector<4x128xf32>
    %21 = vector.broadcast %17 : vector<1x128xf32> to vector<4x128xf32>
    %22 = arith.addf %20, %21 : vector<4x128xf32>
    %c0_15 = arith.constant 0 : index
    %c0_16 = arith.constant 0 : index
    %23 = vector.load %arg6[%c0_15, %c0_16] : memref<4x128xf32, #tpu.memory_space<vmem>>, vector<4x128xf32>
    tpu.vector_store %arg6[%c0_15, %c0_16], %22 {strides = array<i32>} : memref<4x128xf32, #tpu.memory_space<vmem>>, vector<4x128xf32>,
    return
  }
  func.func @transform_0(%arg0: i32) -> (i32, i32) {
    %c0_i32 = arith.constant 0 : i32
    %c0_i32_0 = arith.constant 0 : i32
    return %arg0, %c0_i32 : i32, i32
  }
  func.func @transform_1(%arg0: i32) -> (i32, i32) {
    %c0_i32 = arith.constant 0 : i32
    %c0_i32_0 = arith.constant 0 : i32
    %c0_i32_1 = arith.constant 0 : i32
    return %c0_i32, %c0_i32_0 : i32, i32
  }
  func.func @transform_2(%arg0: i32) -> (i32, i32) {
    %c0_i32 = arith.constant 0 : i32
    %c0_i32_0 = arith.constant 0 : i32
    %c0_i32_1 = arith.constant 0 : i32
    return %c0_i32, %c0_i32_0 : i32, i32
  }
  func.func @transform_3(%arg0: i32) -> (i32, i32) {
    %c0_i32 = arith.constant 0 : i32
    %c0_i32_0 = arith.constant 0 : i32
    %c0_i32_1 = arith.constant 0 : i32
    return %c0_i32, %c0_i32_0 : i32, i32
  }
  func.func @transform_4(%arg0: i32) -> (i32, i32) {
    %c0_i32 = arith.constant 0 : i32
    %c0_i32_0 = arith.constant 0 : i32
    %c0_i32_1 = arith.constant 0 : i32
    return %c0_i32, %c0_i32_0 : i32, i32
  }
  func.func @transform_5(%arg0: i32) -> (i32, i32) {
    %c0_i32 = arith.constant 0 : i32
    %c0_i32_0 = arith.constant 0 : i32
    return %arg0, %c0_i32 : i32, i32
  }
}

</mosaic_0001>

<llo_original>
// kernel: tile.13
$region0: #{tile.13}
  #allocation0 [shape = 's32[1]{0}', space=sflag, size = 0x4, scoped, tag = 'scoped memory for tile.13']
  %s0 = inlined_call_operand.vmem [shape: f32[32], index: 0, kind: input, shape index: {}]
  %s1 = inlined_call_operand.vmem [shape: f32[4,32], index: 1, kind: output, shape index: {}]
  // Predicated region
  $region2: #{tile.13} parent=0 // pred_check
    _
  $region3: #{tile.13} parent=0 // pred_check_branch
    %3 = sbr.rel (0) target = $region5
  $region4: #{tile.13} parent=0 // pred_region
    _
  $region5: #{tile.13} parent=0 // pred_fallthru
    _
  %v4 = vld [vmem:[%s0] ss:$0 sm:$0xff]
  %5 = vst [vmem:[%s1] sm:$0xf] %v4

// kernel: tile.14
$region0: #{tile.14}
  %s0 = inlined_call_operand.vmem [shape: f32[4,32], index: 0, kind: input, shape index: {}]
  %s1 = inlined_call_operand.vmem [shape: f32[1,128], index: 1, kind: output, shape index: {}]
  $region1: #{tile.14} parent=0
    #allocation0 [shape = 'u8[4096]{0}', space=vmem, size = 0x1000, scoped, tag = 'scoped mem for output reshape']
    #allocation1 [shape = 'u8[4096]{0}', space=vmem, size = 0x1000, scoped, tag = 'scoped mem for input reshape']
    %s3 = sshllo.u32 0, 4
    %v4 = vld [vmem:[%s0] sm:%s3]
    %5 = vst [vmem:[#allocation1] sm:%s3] %v4
    %v6 = vld [vmem:[#allocation1] sm:$0x1]
    %vm7 = vcmask 261120
    %8 = vst.msk [vmem:[#allocation0] sm:$0x1] %vm7, %v6
    %s9 = scalar_lea.vmem [#allocation1], 3
    %v10 = vld [vmem:[%s9] sm:$0x1]
    %11 = vrot.lane.b32.xlu0 %v10, 96
    %v12 = vpop.permute.xlu0 %11
    %vm13 = vcmask 1048320
    %14 = vst.msk [vmem:[#allocation0] sm:$0x1] %vm13, %v12
    %s15 = scalar_lea.vmem [#allocation1], 2
    %v16 = vld [vmem:[%s15] sm:$0x1]
    %17 = vrot.lane.b32.xlu0 %v16, 64
    %v18 = vpop.permute.xlu0 %17
    %vm19 = vcmask 785920
    %20 = vst.msk [vmem:[#allocation0] sm:$0x1] %vm19, %v18
    %s21 = scalar_lea.vmem [#allocation1], 1
    %v22 = vld [vmem:[%s21] sm:$0x1]
    %23 = vrot.lane.b32.xlu0 %v22, 32
    %v24 = vpop.permute.xlu0 %23
    %vm25 = vcmask 523520
    %26 = vst.msk [vmem:[#allocation0] sm:$0x1] %vm25, %v24
    %s28 = sshllo.u32 0, 1
    %v30 = vld [vmem:[#allocation0] sm:%s28]
    %s31 = sshllo.u32 0, 1
    %32 = vst [vmem:[%s1] sm:%s31] %v30

// kernel: layer_norm.1
$region0: #{layer_norm.1}
  #allocation0 [shape = 'u32[]', space=smem, size = 0x4, offset = 0x4, fixed_abs, tag = 'smem constant byte address 0x4 - core index']
  #allocation1 [shape = 'u32[144,128]{1,0:T(1,128)}', space=vmem, size = 0x12000, scoped, tag = 'internal scratch']
  %s0 = inlined_call_operand.vmem [shape: f32[4,128], index: 0, kind: input, shape index: {}]
  %s1 = inlined_call_operand.vmem [shape: f32[1,128], index: 1, kind: input, shape index: {}]
  %s2 = inlined_call_operand.vmem [shape: f32[1,128], index: 2, kind: input, shape index: {}]
  %s3 = inlined_call_operand.hbm [shape: f32[128,4], index: 3, kind: input, shape index: {}]
  %s4 = inlined_call_operand.vmem [shape: f32[4,128], index: 4, kind: input, shape index: {}]
  %s5 = inlined_call_operand.vmem [shape: f32[4,128], index: 5, kind: output, shape index: {}]
  %s6 = sld [smem:[#allocation0]]
  $region34: #{layer_norm.1} parent=0
    _
  %s8 = ssub.s32 1, %s6
  %s9 = scalar_select 0, %s8, %s6
  $region1: #{layer_norm.1} parent=0
    #allocation2 [shape = 'u8[65536]{0}', space=vmem, size = 0x10000, scoped, tag = 'input window, operand 3, single buffered']
    #allocation3 [shape = 's32[1]{0}', space=sflag, size = 0x4, scoped, tag = 'scoped memory for layer_norm.1']
    %10 = vsyncpa [#allocation3], 0
    // Predicated region
    $region2: #{layer_norm.1} parent=1 // pred_check
      _
    $region3: #{layer_norm.1} parent=1 // pred_check_branch
      %12 = sbr.rel (0) target = $region5
    $region4: #{layer_norm.1} parent=1 // pred_region
      _
    $region5: #{layer_norm.1} parent=1 // pred_fallthru
      _
    // Predicated region
    $region6: #{layer_norm.1} parent=1 // pred_check
      _
    $region7: #{layer_norm.1} parent=1 // pred_check_branch
      %14 = sbr.rel (0) target = $region9
    $region8: #{layer_norm.1} parent=1 // pred_region
      _
    $region9: #{layer_norm.1} parent=1 // pred_fallthru
      _
    // Predicated region
    $region10: #{layer_norm.1} parent=1 // pred_check
      _
    $region11: #{layer_norm.1} parent=1 // pred_check_branch
      %16 = sbr.rel (0) target = $region13
    $region12: #{layer_norm.1} parent=1 // pred_region
      _
    $region13: #{layer_norm.1} parent=1 // pred_fallthru
      _
    // Predicated region
    $region14: #{layer_norm.1} parent=1 // pred_check
      _
    $region15: #{layer_norm.1} parent=1 // pred_check_branch
      %18 = sbr.rel (0) target = $region17
    $region16: #{layer_norm.1} parent=1 // pred_region
      %s20 = ssub.s32 2048, 2048
      %21 = vsyncadd [#allocation3], %s20
      %s22 = sshll.u32 [#allocation2], 4
      %s23 = int_to_ptr.vmem [resolvable:$true] %s22
      %28 = dma.hbm_to_vmem [thread:$0]  %s3, 2048, %s23, [#allocation3], 128, 128, 8
    $region17: #{layer_norm.1} parent=1 // pred_fallthru
      _
    // Predicated region
    $region18: #{layer_norm.1} parent=1 // pred_check
      _
    $region19: #{layer_norm.1} parent=1 // pred_check_branch
      %30 = sbr.rel (0) target = $region21
    $region20: #{layer_norm.1} parent=1 // pred_region
      _
    $region21: #{layer_norm.1} parent=1 // pred_fallthru
      _
    // Predicated region
    $region22: #{layer_norm.1} parent=1 // pred_check
      _
    $region23: #{layer_norm.1} parent=1 // pred_check_branch
      %32 = sbr.rel (0) target = $region25
    $region24: #{layer_norm.1} parent=1 // pred_region
      %33 = dma.done [#allocation3], 2048
    $region25: #{layer_norm.1} parent=1 // pred_fallthru
      _
    %v34 = vld [vmem:[%s0] sm:$0xf]
    %v35 = vld [vmem:[#allocation2] sm:$0xff]
    %v36 = vld [vmem:[#allocation2 + $0x8] sm:$0xff]
    %v37 = vld [vmem:[#allocation2 + $0x10] sm:$0xff]
    %v38 = vld [vmem:[#allocation2 + $0x18] sm:$0xff]
    %v39 = vld [vmem:[#allocation2 + $0x20] sm:$0xff]
    %v40 = vld [vmem:[#allocation2 + $0x28] sm:$0xff]
    %v41 = vld [vmem:[#allocation2 + $0x30] sm:$0xff]
    %v42 = vld [vmem:[#allocation2 + $0x38] sm:$0xff]
    %v43 = vld [vmem:[#allocation2 + $0x40] sm:$0xff]
    %v44 = vld [vmem:[#allocation2 + $0x48] sm:$0xff]
    %v45 = vld [vmem:[#allocation2 + $0x50] sm:$0xff]
    %v46 = vld [vmem:[#allocation2 + $0x58] sm:$0xff]
    %v47 = vld [vmem:[#allocation2 + $0x60] sm:$0xff]
    %v48 = vld [vmem:[#allocation2 + $0x68] sm:$0xff]
    %v49 = vld [vmem:[#allocation2 + $0x70] sm:$0xff]
    %v50 = vld [vmem:[#allocation2 + $0x78] sm:$0xff]
    %v51 = vld [vmem:[%s4] sm:$0xf]
    %52 = vmatprep.subr.mxu0 0.0
    %53 = vmatpush1.msra.mxu0 %v35
    %54 = vmatprep.subr.mxu0 0.0
    %55 = vmatpush1.msra.mxu0 %v36
    %56 = vmatprep.subr.mxu0 0.0
    %57 = vmatpush1.msra.mxu0 %v37
    %58 = vmatprep.subr.mxu0 0.0
    %59 = vmatpush1.msra.mxu0 %v38
    %60 = vmatprep.subr.mxu0 0.0
    %61 = vmatpush1.msra.mxu0 %v39
    %62 = vmatprep.subr.mxu0 0.0
    %63 = vmatpush1.msra.mxu0 %v40
    %64 = vmatprep.subr.mxu0 0.0
    %65 = vmatpush1.msra.mxu0 %v41
    %66 = vmatprep.subr.mxu0 0.0
    %67 = vmatpush1.msra.mxu0 %v42
    %68 = vmatprep.subr.mxu0 0.0
    %69 = vmatpush1.msra.mxu0 %v43
    %70 = vmatprep.subr.mxu0 0.0
    %71 = vmatpush1.msra.mxu0 %v44
    %72 = vmatprep.subr.mxu0 0.0
    %73 = vmatpush1.msra.mxu0 %v45
    %74 = vmatprep.subr.mxu0 0.0
    %75 = vmatpush1.msra.mxu0 %v46
    %76 = vmatprep.subr.mxu0 0.0
    %77 = vmatpush1.msra.mxu0 %v47
    %78 = vmatprep.subr.mxu0 0.0
    %79 = vmatpush1.msra.mxu0 %v48
    %80 = vmatprep.subr.mxu0 0.0
    %81 = vmatpush1.msra.mxu0 %v49
    %82 = vmatprep.subr.mxu0 0.0
    %83 = vmatpush1.msra.mxu0 %v50
    %84 = vmatprep.subr.mxu0 0.0
    %85 = vmatpush1.msra.mxu0 0.0
    %86 = vmatprep.subr.mxu0 0.0
    %87 = vmatpush1.msra.mxu0 0.0
    %88 = vmatprep.subr.mxu0 0.0
    %89 = vmatpush1.msra.mxu0 0.0
    %90 = vmatprep.subr.mxu0 0.0
    %91 = vmatpush1.msra.mxu0 0.0
    %92 = vmatprep.subr.mxu0 0.0
    %93 = vmatpush1.msra.mxu0 0.0
    %94 = vmatprep.subr.mxu0 0.0
    %95 = vmatpush1.msra.mxu0 0.0
    %96 = vmatprep.subr.mxu0 0.0
    %97 = vmatpush1.msra.mxu0 0.0
    %98 = vmatprep.subr.mxu0 0.0
    %99 = vmatpush1.msra.mxu0 0.0
    %100 = vmatprep.subr.mxu0 0.0
    %101 = vmatpush1.msra.mxu0 0.0
    %102 = vmatprep.subr.mxu0 0.0
    %103 = vmatpush1.msra.mxu0 0.0
    %104 = vmatprep.subr.mxu0 0.0
    %105 = vmatpush1.msra.mxu0 0.0
    %106 = vmatprep.subr.mxu0 0.0
    %107 = vmatpush1.msra.mxu0 0.0
    %108 = vmatprep.subr.mxu0 0.0
    %109 = vmatpush1.msra.mxu0 0.0
    %110 = vmatprep.subr.mxu0 0.0
    %111 = vmatpush1.msra.mxu0 0.0
    %112 = vmatprep.subr.mxu0 0.0
    %113 = vmatpush1.msra.mxu0 0.0
    %114 = vmatprep.subr.mxu0 0.0
    %115 = vmatpush1.msra.mxu0 0.0
    %116 = vmatprep.mubr.f32.mxu0 0.0
    %117 = vmatmul.mubr.f32.gmra.mrb[0].mxu0 %v34
    %v118 = vpop.f32.mrb[0].mxu0
    %v119 = vadd.f32 0.0, %v118
    %v120 = vpop.f32.mrb[0].mxu0
    %121 = vdwg.mxu0
    %v122 = vmul.f32 %v119, 0.03125
    %vm123 = vcmask 31744
    %v125 = vsel %vm123, %v122, 0
    %vm127 = vcmask 1043456
    %v129 = vsel %vm127, %v51, 0
    %131 = vmatprep.subr.mxu0 0.0
    %132 = vmatpush1.msra.mxu0 %v129
    %133 = vmatprep.subr.mxu0 0.0
    %134 = vmatpush1.msra.mxu0 0.0
    %135 = vmatprep.subr.mxu0 0.0
    %136 = vmatpush1.msra.mxu0 0.0
    %137 = vmatprep.subr.mxu0 0.0
    %138 = vmatpush1.msra.mxu0 0.0
    %139 = vmatprep.subr.mxu0 0.0
    %140 = vmatpush1.msra.mxu0 0.0
    %141 = vmatprep.subr.mxu0 0.0
    %142 = vmatpush1.msra.mxu0 0.0
    %143 = vmatprep.subr.mxu0 0.0
    %144 = vmatpush1.msra.mxu0 0.0
    %145 = vmatprep.subr.mxu0 0.0
    %146 = vmatpush1.msra.mxu0 0.0
    %147 = vmatprep.subr.mxu0 0.0
    %148 = vmatpush1.msra.mxu0 0.0
    %149 = vmatprep.subr.mxu0 0.0
    %150 = vmatpush1.msra.mxu0 0.0
    %151 = vmatprep.subr.mxu0 0.0
    %152 = vmatpush1.msra.mxu0 0.0
    %153 = vmatprep.subr.mxu0 0.0
    %154 = vmatpush1.msra.mxu0 0.0
    %155 = vmatprep.subr.mxu0 0.0
    %156 = vmatpush1.msra.mxu0 0.0
    %157 = vmatprep.subr.mxu0 0.0
    %158 = vmatpush1.msra.mxu0 0.0
    %159 = vmatprep.subr.mxu0 0.0
    %160 = vmatpush1.msra.mxu0 0.0
    %161 = vmatprep.subr.mxu0 0.0
    %162 = vmatpush1.msra.mxu0 0.0
    %163 = vmatprep.subr.mxu0 0.0
    %164 = vmatpush1.msra.mxu0 0.0
    %165 = vmatprep.subr.mxu0 0.0
    %166 = vmatpush1.msra.mxu0 0.0
    %167 = vmatprep.subr.mxu0 0.0
    %168 = vmatpush1.msra.mxu0 0.0
    %169 = vmatprep.subr.mxu0 0.0
    %170 = vmatpush1.msra.mxu0 0.0
    %171 = vmatprep.subr.mxu0 0.0
    %172 = vmatpush1.msra.mxu0 0.0
    %173 = vmatprep.subr.mxu0 0.0
    %174 = vmatpush1.msra.mxu0 0.0
    %175 = vmatprep.subr.mxu0 0.0
    %176 = vmatpush1.msra.mxu0 0.0
    %177 = vmatprep.subr.mxu0 0.0
    %178 = vmatpush1.msra.mxu0 0.0
    %179 = vmatprep.subr.mxu0 0.0
    %180 = vmatpush1.msra.mxu0 0.0
    %181 = vmatprep.subr.mxu0 0.0
    %182 = vmatpush1.msra.mxu0 0.0
    %183 = vmatprep.subr.mxu0 0.0
    %184 = vmatpush1.msra.mxu0 0.0
    %185 = vmatprep.subr.mxu0 0.0
    %186 = vmatpush1.msra.mxu0 0.0
    %187 = vmatprep.subr.mxu0 0.0
    %188 = vmatpush1.msra.mxu0 0.0
    %189 = vmatprep.subr.mxu0 0.0
    %190 = vmatpush1.msra.mxu0 0.0
    %191 = vmatprep.subr.mxu0 0.0
    %192 = vmatpush1.msra.mxu0 0.0
    %193 = vmatprep.subr.mxu0 0.0
    %194 = vmatpush1.msra.mxu0 0.0
    %195 = vmatprep.mubr.f32.mxu0 0.0
    %196 = vmatmul.mubr.f32.gmra.mrb[0].mxu0 %v125
    %v197 = vpop.f32.mrb[0].mxu0
    %v198 = vadd.f32 0.0, %v197
    %v199 = vpop.f32.mrb[0].mxu0
    %200 = vdwg.mxu0
    %v201 = vsub.f32 %v34, %v198
    %v202 = vmul.f32 %v201, %v201
    %203 = vmatprep.subr.mxu0 0.0
    %204 = vmatpush1.msra.mxu0 %v35
    %205 = vmatprep.subr.mxu0 0.0
    %206 = vmatpush1.msra.mxu0 %v36
    %207 = vmatprep.subr.mxu0 0.0
    %208 = vmatpush1.msra.mxu0 %v37
    %209 = vmatprep.subr.mxu0 0.0
    %210 = vmatpush1.msra.mxu0 %v38
    %211 = vmatprep.subr.mxu0 0.0
    %212 = vmatpush1.msra.mxu0 %v39
    %213 = vmatprep.subr.mxu0 0.0
    %214 = vmatpush1.msra.mxu0 %v40
    %215 = vmatprep.subr.mxu0 0.0
    %216 = vmatpush1.msra.mxu0 %v41
    %217 = vmatprep.subr.mxu0 0.0
    %218 = vmatpush1.msra.mxu0 %v42
    %219 = vmatprep.subr.mxu0 0.0
    %220 = vmatpush1.msra.mxu0 %v43
    %221 = vmatprep.subr.mxu0 0.0
    %222 = vmatpush1.msra.mxu0 %v44
    %223 = vmatprep.subr.mxu0 0.0
    %224 = vmatpush1.msra.mxu0 %v45
    %225 = vmatprep.subr.mxu0 0.0
    %226 = vmatpush1.msra.mxu0 %v46
    %227 = vmatprep.subr.mxu0 0.0
    %228 = vmatpush1.msra.mxu0 %v47
    %229 = vmatprep.subr.mxu0 0.0
    %230 = vmatpush1.msra.mxu0 %v48
    %231 = vmatprep.subr.mxu0 0.0
    %232 = vmatpush1.msra.mxu0 %v49
    %233 = vmatprep.subr.mxu0 0.0
    %234 = vmatpush1.msra.mxu0 %v50
    %235 = vmatprep.subr.mxu0 0.0
    %236 = vmatpush1.msra.mxu0 0.0
    %237 = vmatprep.subr.mxu0 0.0
    %238 = vmatpush1.msra.mxu0 0.0
    %239 = vmatprep.subr.mxu0 0.0
    %240 = vmatpush1.msra.mxu0 0.0
    %241 = vmatprep.subr.mxu0 0.0
    %242 = vmatpush1.msra.mxu0 0.0
    %243 = vmatprep.subr.mxu0 0.0
    %244 = vmatpush1.msra.mxu0 0.0
    %245 = vmatprep.subr.mxu0 0.0
    %246 = vmatpush1.msra.mxu0 0.0
    %247 = vmatprep.subr.mxu0 0.0
    %248 = vmatpush1.msra.mxu0 0.0
    %249 = vmatprep.subr.mxu0 0.0
    %250 = vmatpush1.msra.mxu0 0.0
    %251 = vmatprep.subr.mxu0 0.0
    %252 = vmatpush1.msra.mxu0 0.0
    %253 = vmatprep.subr.mxu0 0.0
    %254 = vmatpush1.msra.mxu0 0.0
    %255 = vmatprep.subr.mxu0 0.0
    %256 = vmatpush1.msra.mxu0 0.0
    %257 = vmatprep.subr.mxu0 0.0
    %258 = vmatpush1.msra.mxu0 0.0
    %259 = vmatprep.subr.mxu0 0.0
    %260 = vmatpush1.msra.mxu0 0.0
    %261 = vmatprep.subr.mxu0 0.0
    %262 = vmatpush1.msra.mxu0 0.0
    %263 = vmatprep.subr.mxu0 0.0
    %264 = vmatpush1.msra.mxu0 0.0
    %265 = vmatprep.subr.mxu0 0.0
    %266 = vmatpush1.msra.mxu0 0.0
    %267 = vmatprep.mubr.f32.mxu0 0.0
    %268 = vmatmul.mubr.f32.gmra.mrb[0].mxu0 %v202
    %v269 = vpop.f32.mrb[0].mxu0
    %v270 = vadd.f32 0.0, %v269
    %v271 = vpop.f32.mrb[0].mxu0
    %272 = vdwg.mxu0
    %v273 = vmul.f32 %v270, 0.03125
    %v274 = vadd.f32 %v273, 1e-05
    %v275 = vrsqrt.pop %v274
    %v277 = vsel %vm123, %v275, 0
    %279 = vmatprep.subr.mxu0 0.0
    %280 = vmatpush1.msra.mxu0 %v129
    %281 = vmatprep.subr.mxu0 0.0
    %282 = vmatpush1.msra.mxu0 0.0
    %283 = vmatprep.subr.mxu0 0.0
    %284 = vmatpush1.msra.mxu0 0.0
    %285 = vmatprep.subr.mxu0 0.0
    %286 = vmatpush1.msra.mxu0 0.0
    %287 = vmatprep.subr.mxu0 0.0
    %288 = vmatpush1.msra.mxu0 0.0
    %289 = vmatprep.subr.mxu0 0.0
    %290 = vmatpush1.msra.mxu0 0.0
    %291 = vmatprep.subr.mxu0 0.0
    %292 = vmatpush1.msra.mxu0 0.0
    %293 = vmatprep.subr.mxu0 0.0
    %294 = vmatpush1.msra.mxu0 0.0
    %295 = vmatprep.subr.mxu0 0.0
    %296 = vmatpush1.msra.mxu0 0.0
    %297 = vmatprep.subr.mxu0 0.0
    %298 = vmatpush1.msra.mxu0 0.0
    %299 = vmatprep.subr.mxu0 0.0
    %300 = vmatpush1.msra.mxu0 0.0
    %301 = vmatprep.subr.mxu0 0.0
    %302 = vmatpush1.msra.mxu0 0.0
    %303 = vmatprep.subr.mxu0 0.0
    %304 = vmatpush1.msra.mxu0 0.0
    %305 = vmatprep.subr.mxu0 0.0
    %306 = vmatpush1.msra.mxu0 0.0
    %307 = vmatprep.subr.mxu0 0.0
    %308 = vmatpush1.msra.mxu0 0.0
    %309 = vmatprep.subr.mxu0 0.0
    %310 = vmatpush1.msra.mxu0 0.0
    %311 = vmatprep.subr.mxu0 0.0
    %312 = vmatpush1.msra.mxu0 0.0
    %313 = vmatprep.subr.mxu0 0.0
    %314 = vmatpush1.msra.mxu0 0.0
    %315 = vmatprep.subr.mxu0 0.0
    %316 = vmatpush1.msra.mxu0 0.0
    %317 = vmatprep.subr.mxu0 0.0
    %318 = vmatpush1.msra.mxu0 0.0
    %319 = vmatprep.subr.mxu0 0.0
    %320 = vmatpush1.msra.mxu0 0.0
    %321 = vmatprep.subr.mxu0 0.0
    %322 = vmatpush1.msra.mxu0 0.0
    %323 = vmatprep.subr.mxu0 0.0
    %324 = vmatpush1.msra.mxu0 0.0
    %325 = vmatprep.subr.mxu0 0.0
    %326 = vmatpush1.msra.mxu0 0.0
    %327 = vmatprep.subr.mxu0 0.0
    %328 = vmatpush1.msra.mxu0 0.0
    %329 = vmatprep.subr.mxu0 0.0
    %330 = vmatpush1.msra.mxu0 0.0
    %331 = vmatprep.subr.mxu0 0.0
    %332 = vmatpush1.msra.mxu0 0.0
    %333 = vmatprep.subr.mxu0 0.0
    %334 = vmatpush1.msra.mxu0 0.0
    %335 = vmatprep.subr.mxu0 0.0
    %336 = vmatpush1.msra.mxu0 0.0
    %337 = vmatprep.subr.mxu0 0.0
    %338 = vmatpush1.msra.mxu0 0.0
    %339 = vmatprep.subr.mxu0 0.0
    %340 = vmatpush1.msra.mxu0 0.0
    %341 = vmatprep.subr.mxu0 0.0
    %342 = vmatpush1.msra.mxu0 0.0
    %343 = vmatprep.mubr.f32.mxu0 0.0
    %344 = vmatmul.mubr.f32.gmra.mrb[0].mxu0 %v277
    %v345 = vpop.f32.mrb[0].mxu0
    %v346 = vadd.f32 0.0, %v345
    %v347 = vpop.f32.mrb[0].mxu0
    %348 = vdwg.mxu0
    %v349 = vld [vmem:[%s1] sm:$0x1]
    %v350 = vld [vmem:[%s2] sm:$0x1]
    %v351 = vmul.f32 %v201, %v346
    %v353 = vlaneseq
    %v354 = vshrl.u32 %v353, 7
    %v355 = vsub.s32 0, %v354
    %v356 = vrot.slane %v349, %v355
    %v358 = vmul.f32 %v351, %v356
    %v360 = vlaneseq
    %v361 = vshrl.u32 %v360, 7
    %v362 = vsub.s32 0, %v361
    %v363 = vrot.slane %v350, %v362
    %v365 = vadd.f32 %v358, %v363
    %366 = vst [vmem:[%s5] sm:$0xf] %v365
    // Predicated region
    $region26: #{layer_norm.1} parent=1 // pred_check
      _
    $region27: #{layer_norm.1} parent=1 // pred_check_branch
      %368 = sbr.rel (0) target = $region29
    $region28: #{layer_norm.1} parent=1 // pred_region
      _
    $region29: #{layer_norm.1} parent=1 // pred_fallthru
      _
    // Predicated region
    $region30: #{layer_norm.1} parent=1 // pred_check
      _
    $region31: #{layer_norm.1} parent=1 // pred_check_branch
      %370 = sbr.rel (0) target = $region33
    $region32: #{layer_norm.1} parent=1 // pred_region
      _
    $region33: #{layer_norm.1} parent=1 // pred_fallthru
      _
    %371 = vsyncpa [#allocation3], 1

</llo_original>
